<compile_context>
chip_gen: v5e
topology: v5e:2x2
jax: 0.10.0
libtpu: 0.0.40
codegen_flags: <defaults>
</compile_context>

<pallas_src>
import jax
import jax.numpy as jnp
from jax.experimental import pallas as pl
from jax.experimental.pallas import tpu as pltpu

LN_EPS = 1e-12  # config.layer_norm_eps


def _round_up(x, m):
    return (x + m - 1) // m * m


def _vmem_limit_bytes():
    """Per-generation VMEM limit: ~3/4 of physical, capped well below v5e/v6e's 128 MiB."""
    cap = 64 * 1024 * 1024  # conservative default (v7x per-core VMEM)
    try:
        info = pltpu.get_tpu_info()
        cap = int(getattr(info, "vmem_capacity_bytes", cap) or cap)
    except Exception:
        pass
    return max(32 * 1024 * 1024, min((cap * 3) // 4, 112 * 1024 * 1024))


def _pick_decoder_tile(E, H, budget_bytes):
    """Pick the decoder E-tile width TE and padded weight width E_pad."""
    e128 = _round_up(max(E, 1), 128)
    te = 128
    for cand in sorted({128, 256, 512, 1024, 2048, 4096, e128}, reverse=True):
        if cand > e128:
            continue
        # Double-buffered wdec tile (bf16) + worst-case f32 output tile (TM<=1024)
        # + double-buffered hn tile (bf16) + bias.
        need = 2 * cand * H * 2 + 2 * 1024 * cand * 4 + 2 * 1024 * H * 2 + 2 * cand * 4
        if need <= budget_bytes:
            te = cand
            break
    if te >= E:
        # Single full-width tile: block == full array dim, no padding, no masking.
        return E, E
    return te, _round_up(E, te)


# ----------------------------------------------------------------------------
# Phase 1: per-batch dense + exact GELU + BertLayerNorm (stats over (S, H)).
# gamma/beta are NOT applied here; they are folded into the decoder weights.
# ----------------------------------------------------------------------------
def _dense_gelu_ln_kernel(f_ref, wdt_ref, bd_ref, hn_ref):
    # f_ref:   (1, S, H) features for one batch element (f32)
    # wdt_ref: (H, H)    dense weight, pre-transposed so h = x @ wdt   (bf16)
    # bd_ref:  (1, H)    dense bias (f32)
    # hn_ref:  (1, S, H) output: LayerNorm(gelu(dense(x))) without gamma/beta (bf16)
    x = f_ref[0].astype(jnp.bfloat16)                                    # (S, H)
    h = jnp.dot(x, wdt_ref[...], preferred_element_type=jnp.float32)     # (S, H) f32
    h = h + bd_ref[...]
    # exact (erf-based) GELU, matching F.gelu default
    h = 0.5 * h * (1.0 + jax.lax.erf(h * jnp.float32(0.7071067811865476)))
    # BertLayerNorm stats over the whole (S, H) slab (dims (1, 2) of (B, S, H)).
    # Two-pass (mean, then centered sum of squares) for numerical robustness.
    n = jnp.float32(h.shape[0] * h.shape[1])
    mean = jnp.sum(h, keepdims=True) / n                                 # (1, 1)
    c = h - mean
    var = jnp.sum(c * c, keepdims=True) / n                              # (1, 1)
    hn_ref[0] = (c * jax.lax.rsqrt(var + jnp.float32(LN_EPS))).astype(hn_ref.dtype)


# ----------------------------------------------------------------------------
# Phase 2: decoder over the flattened (B*S, H) slab.
# ----------------------------------------------------------------------------
def _decoder_kernel(hn_ref, wdec_ref, bias_ref, o_ref):
    # hn_ref:   (TM, H)  normalized activations (bf16)
    # wdec_ref: (H, TE)  gamma-folded, pre-transposed decoder weight (bf16)
    # bias_ref: (1, TE)  folded LN-beta contribution = W_dec @ beta (f32)
    # o_ref:    (TM, TE) output tile
    acc = jnp.dot(hn_ref[...], wdec_ref[...], preferred_element_type=jnp.float32)
    o_ref[...] = (acc + bias_ref[...]).astype(o_ref.dtype)


def prepare_entlm_params(wd, bd, gamma, beta, wdec, *, vmem_limit=None):
    """One-time weight preprocessing (cache and reuse across calls).

    Folds LayerNorm gamma/beta into the decoder, pre-transposes both weights
    into (in, out) layout, pads the decoder weight to the tile width and casts
    the MXU operands to bf16.
    """
    H = wd.shape[1]
    E = wdec.shape[0]
    if vmem_limit is None:
        vmem_limit = _vmem_limit_bytes()
    TE, E_pad = _pick_decoder_tile(E, H, (vmem_limit * 3) // 5)

    wd_t = jnp.asarray(wd, jnp.float32).T.astype(jnp.bfloat16)            # (H, H): h = x @ wd_t
    bd2 = jnp.asarray(bd, jnp.float32).reshape(1, H)
    wdec_f = jnp.asarray(wdec, jnp.float32)
    gamma_f = jnp.asarray(gamma, jnp.float32)
    beta_f = jnp.asarray(beta, jnp.float32)
    # fold LN affine into the decoder: (g*hn + b) @ W^T == hn @ (W*g)^T + (W @ b)
    wdec_t = (wdec_f * gamma_f[None, :]).T.astype(jnp.bfloat16)           # (H, E)
    dec_bias = (wdec_f @ beta_f).reshape(1, E).astype(jnp.float32)        # (1, E)
    if E_pad != E:
        wdec_t = jnp.pad(wdec_t, ((0, 0), (0, E_pad - E)))
        dec_bias = jnp.pad(dec_bias, ((0, 0), (0, E_pad - E)))
    return dict(wd_t=wd_t, bd=bd2, wdec_t=wdec_t, dec_bias=dec_bias,
                H=H, E=E, E_pad=E_pad, TE=TE, vmem_limit=vmem_limit)


def entlm_head(features, wd, bd, gamma, beta, wdec, *, params=None, out_dtype=None):
    """features: (B, S, H); wd: (H, H) torch (out,in); wdec: (E, H) torch (out,in)."""
    B, S, H = features.shape
    E = wdec.shape[0]
    if params is None:
        params = prepare_entlm_params(wd, bd, gamma, beta, wdec)
    out_dtype = features.dtype if out_dtype is None else out_dtype
    vmem_limit = params["vmem_limit"]
    TE, E_pad = params["TE"], params["E_pad"]

    # ---- phase 1: per-batch dense + GELU + LayerNorm --------------------------
    hn = pl.pallas_call(
        _dense_gelu_ln_kernel,
        out_shape=jax.ShapeDtypeStruct((B, S, H), jnp.bfloat16),
        grid_spec=pltpu.PrefetchScalarGridSpec(
            num_scalar_prefetch=0,
            grid=(B,),
            in_specs=[
                pl.BlockSpec((1, S, H), lambda b: (b, 0, 0)),   # features (per batch)
                pl.BlockSpec((H, H), lambda b: (0, 0)),         # dense weight (resident)
                pl.BlockSpec((1, H), lambda b: (0, 0)),         # dense bias (resident)
            ],
            out_specs=pl.BlockSpec((1, S, H), lambda b: (b, 0, 0)),
        ),
        compiler_params=pltpu.CompilerParams(
            dimension_semantics=("parallel",),
            vmem_limit_bytes=vmem_limit,
        ),
    )(features, params["wd_t"], params["bd"])

    # ---- phase 2: decoder over the flattened (B*S, H) slab --------------------
    BS = B * S
    hn2 = hn.reshape(BS, H)                      # contiguous merge of leading dims
    TM = min(1024, BS) if BS % 8 == 0 else BS    # fill the MXU M dimension
    grid_m = pl.cdiv(BS, TM)
    grid_e = E_pad // TE

    out = pl.pallas_call(
        _decoder_kernel,
        out_shape=jax.ShapeDtypeStruct((BS, E), out_dtype),   # exact E: no post-call slice
        grid_spec=pltpu.PrefetchScalarGridSpec(
            num_scalar_prefetch=0,
            # E tiles are the OUTER axis: each decoder-weight tile is streamed from
            # HBM exactly once per call, and megacore shards this parallel axis so
            # each TensorCore streams half of the weight.
            grid=(grid_e, grid_m),
            in_specs=[
                pl.BlockSpec((TM, H), lambda e, m: (m, 0)),     # normalized activations
                pl.BlockSpec((H, TE), lambda e, m: (0, e)),     # decoder weight tile
                pl.BlockSpec((1, TE), lambda e, m: (0, e)),     # folded LN-beta bias tile
            ],
            out_specs=pl.BlockSpec((TM, TE), lambda e, m: (m, e)),
        ),
        compiler_params=pltpu.CompilerParams(
            dimension_semantics=("parallel", "parallel"),
            vmem_limit_bytes=vmem_limit,
        ),
    )(hn2, params["wdec_t"], params["dec_bias"])

    return out.reshape(B, S, E)


def entlm_head_ref(features, wd, bd, gamma, beta, wdec):
    """Pure-JAX f32 reference matching the PyTorch module (eval mode)."""
    x = features @ wd.T + bd
    x = 0.5 * x * (1.0 + jax.lax.erf(x / jnp.sqrt(2.0)))
    u = jnp.mean(x, axis=(1, 2), keepdims=True)
    s = jnp.mean((x - u) ** 2, axis=(1, 2), keepdims=True)
    x = (x - u) / jnp.sqrt(s + LN_EPS)
    x = gamma * x + beta
    return x @ wdec.T


def _run_case(key, B, S, H, E):
    k_f, k_wd, k_bd, k_g, k_b, k_wdec = jax.random.split(key, 6)
    features = jax.random.normal(k_f, (B, S, H), dtype=jnp.float32)
    wd = jax.random.normal(k_wd, (H, H), dtype=jnp.float32) * 0.05      # torch (out,in)
    bd = jax.random.normal(k_bd, (H,), dtype=jnp.float32) * 0.05
    gamma = 1.0 + 0.1 * jax.random.normal(k_g, (H,), dtype=jnp.float32)
    beta = 0.1 * jax.random.normal(k_b, (H,), dtype=jnp.float32)
    wdec = jax.random.normal(k_wdec, (E, H), dtype=jnp.float32) * 0.05  # torch (out,in)

    params = prepare_entlm_params(wd, bd, gamma, beta, wdec)   # one-time, cacheable
    out = jax.block_until_ready(
        entlm_head(features, wd, bd, gamma, beta, wdec, params=params))
    ref = entlm_head_ref(features, wd, bd, gamma, beta, wdec)
    assert out.shape == (B, S, E), out.shape
    # bf16 MXU operands / bf16 staged activations with f32 accumulation.
    err = float(jnp.max(jnp.abs(out - ref)))
    assert jnp.allclose(out, ref, rtol=2e-2, atol=2e-2), err


if __name__ == "__main__":
    key = jax.random.PRNGKey(0)
    k1, k2 = jax.random.split(key)
    # small shapes consistent with the module
    _run_case(k1, B=2, S=8, H=32, E=16)    # E < 128: narrow single decoder tile
    _run_case(k2, B=2, S=8, H=32, E=600)   # non-128-multiple E: full-width tile
    print("KERNEL_OK")
</pallas_src>

<mosaic_0001>
module attributes {stable_mosaic.version = 11 : i64} {
  func.func @_dense_gelu_ln_kernel(%arg0: i32, %arg1: memref<1x8x32xf32, #tpu.memory_space<vmem>>, %arg2: memref<32x32xbf16, #tpu.memory_space<vmem>>, %arg3: memref<1x32xf32, #tpu.memory_space<vmem>>, %arg4: memref<1x8x32xbf16, #tpu.memory_space<vmem>>) attributes {dimension_semantics = [#tpu.dimension_semantics<parallel>], iteration_bounds = array<i64: 2>, scalar_prefetch = 0 : i64, scratch_operands = 0 : i64, tpu.core_type = #tpu.core_type<tc>, window_params = [{transform_indices = @transform_0, window_bounds = array<i64: 1, 8, 32>}, {pipeline_mode = #tpu.pipeline_mode<synchronous>, transform_indices = @transform_1, window_bounds = array<i64: 32, 32>}, {pipeline_mode = #tpu.pipeline_mode<synchronous>, transform_indices = @transform_2, window_bounds = array<i64: 1, 32>}, {transform_indices = @transform_3, window_bounds = array<i64: 1, 8, 32>}]} {
    %c0 = arith.constant 0 : index
    %c0_0 = arith.constant 0 : index
    %c0_1 = arith.constant 0 : index
    %0 = vector.load %arg1[%c0, %c0_0, %c0_1] : memref<1x8x32xf32, #tpu.memory_space<vmem>>, vector<1x8x32xf32>
    %1 = vector.shape_cast %0 : vector<1x8x32xf32> to vector<8x32xf32>
    %2 = arith.truncf %1 : vector<8x32xf32> to vector<8x32xbf16>
    %c0_2 = arith.constant 0 : index
    %c0_3 = arith.constant 0 : index
    %3 = vector.load %arg2[%c0_2, %c0_3] : memref<32x32xbf16, #tpu.memory_space<vmem>>, vector<32x32xbf16>
    %cst = arith.constant dense<0.000000e+00> : vector<8x32xf32>
    %4 = tpu.matmul %2, %3, %cst {dimension_numbers = #tpu.dot_dimension_numbers<[1], [0], [0], [1], [0, 0, 1, 1], [], []>} : vector<8x32xbf16>, vector<32x32xbf16>, vector<8x32xf32> -> vector<8x32xf32>
    %c0_4 = arith.constant 0 : index
    %c0_5 = arith.constant 0 : index
    %5 = vector.load %arg3[%c0_4, %c0_5] : memref<1x32xf32, #tpu.memory_space<vmem>>, vector<1x32xf32>
    %6 = vector.broadcast %5 : vector<1x32xf32> to vector<8x32xf32>
    %7 = arith.addf %4, %6 : vector<8x32xf32>
    %cst_6 = arith.constant 5.000000e-01 : f32
    %8 = vector.broadcast %cst_6 : f32 to vector<8x32xf32>
    %9 = arith.mulf %8, %7 : vector<8x32xf32>
    %cst_7 = arith.constant 0.707106769 : f32
    %10 = vector.broadcast %cst_7 : f32 to vector<8x32xf32>
    %11 = arith.mulf %7, %10 : vector<8x32xf32>
    %12 = math.erf %11 : vector<8x32xf32>
    %cst_8 = arith.constant 1.000000e+00 : f32
    %13 = vector.broadcast %cst_8 : f32 to vector<8x32xf32>
    %14 = arith.addf %13, %12 : vector<8x32xf32>
    %15 = arith.mulf %9, %14 : vector<8x32xf32>
    %16 = vector.shape_cast %15 : vector<8x32xf32> to vector<1x8x32xf32>
    %cst_9 = arith.constant dense<0.000000e+00> : vector<1xf32>
    %17 = vector.multi_reduction <add>, %16, %cst_9 [1, 2] : vector<1x8x32xf32> to vector<1xf32>
    %18 = vector.shape_cast %17 : vector<1xf32> to vector<1x1x1xf32>
    %19 = vector.extract %18[0, 0, 0] : f32 from vector<1x1x1xf32>
    %20 = vector.broadcast %19 : f32 to vector<1x1xf32>
    %cst_10 = arith.constant 2.560000e+02 : f32
    %21 = vector.broadcast %cst_10 : f32 to vector<1x1xf32>
    %22 = arith.divf %20, %21 : vector<1x1xf32>
    %23 = vector.broadcast %22 : vector<1x1xf32> to vector<8x32xf32>
    %24 = arith.subf %15, %23 : vector<8x32xf32>
    %25 = arith.mulf %24, %24 : vector<8x32xf32>
    %26 = vector.shape_cast %25 : vector<8x32xf32> to vector<1x8x32xf32>
    %cst_11 = arith.constant dense<0.000000e+00> : vector<1xf32>
    %27 = vector.multi_reduction <add>, %26, %cst_11 [1, 2] : vector<1x8x32xf32> to vector<1xf32>
    %28 = vector.shape_cast %27 : vector<1xf32> to vector<1x1x1xf32>
    %29 = vector.extract %28[0, 0, 0] : f32 from vector<1x1x1xf32>
    %30 = vector.broadcast %29 : f32 to vector<1x1xf32>
    %cst_12 = arith.constant 2.560000e+02 : f32
    %31 = vector.broadcast %cst_12 : f32 to vector<1x1xf32>
    %32 = arith.divf %30, %31 : vector<1x1xf32>
    %cst_13 = arith.constant 9.99999996E-13 : f32
    %33 = vector.broadcast %cst_13 : f32 to vector<1x1xf32>
    %34 = arith.addf %32, %33 : vector<1x1xf32>
    %35 = math.rsqrt %34 : vector<1x1xf32>
    %36 = vector.broadcast %35 : vector<1x1xf32> to vector<8x32xf32>
    %37 = arith.mulf %24, %36 : vector<8x32xf32>
    %38 = arith.truncf %37 : vector<8x32xf32> to vector<8x32xbf16>
    %c0_14 = arith.constant 0 : index
    %c0_15 = arith.constant 0 : index
    %c0_16 = arith.constant 0 : index
    %39 = vector.load %arg4[%c0_14, %c0_15, %c0_16] : memref<1x8x32xbf16, #tpu.memory_space<vmem>>, vector<1x8x32xbf16>
    %40 = vector.shape_cast %39 : vector<1x8x32xbf16> to vector<8x32xbf16>
    %41 = vector.shape_cast %38 : vector<8x32xbf16> to vector<1x8x32xbf16>
    tpu.vector_store %arg4[%c0_14, %c0_15, %c0_16], %41 {strides = array<i32>} : memref<1x8x32xbf16, #tpu.memory_space<vmem>>, vector<1x8x32xbf16>,
    return
  }
  func.func @transform_0(%arg0: i32) -> (i32, i32, i32) {
    %c0_i32 = arith.constant 0 : i32
    %c0_i32_0 = arith.constant 0 : i32
    %c0_i32_1 = arith.constant 0 : i32
    return %arg0, %c0_i32, %c0_i32_0 : i32, i32, i32
  }
  func.func @transform_1(%arg0: i32) -> (i32, i32) {
    %c0_i32 = arith.constant 0 : i32
    %c0_i32_0 = arith.constant 0 : i32
    %c0_i32_1 = arith.constant 0 : i32
    return %c0_i32, %c0_i32_0 : i32, i32
  }
  func.func @transform_2(%arg0: i32) -> (i32, i32) {
    %c0_i32 = arith.constant 0 : i32
    %c0_i32_0 = arith.constant 0 : i32
    %c0_i32_1 = arith.constant 0 : i32
    return %c0_i32, %c0_i32_0 : i32, i32
  }
  func.func @transform_3(%arg0: i32) -> (i32, i32, i32) {
    %c0_i32 = arith.constant 0 : i32
    %c0_i32_0 = arith.constant 0 : i32
    %c0_i32_1 = arith.constant 0 : i32
    return %arg0, %c0_i32, %c0_i32_0 : i32, i32, i32
  }
}

</mosaic_0001>

<llo_original>
// kernel: tpu_custom_call.1
$region0: #{tpu_custom_call.1}
  #allocation0 [shape = 'u32[]', space=smem, size = 0x4, offset = 0x4, fixed_abs, tag = 'smem constant byte address 0x4 - core index']
  #allocation1 [shape = 'u32[72,128]{1,0:T(1,128)}', space=vmem, size = 0x9000, scoped, tag = 'internal scratch']
  %s0 = inlined_call_operand.hbm [shape: f32[2,8,32], index: 0, kind: input, shape index: {}]
  %s1 = inlined_call_operand.hbm [shape: bf16[32,32], index: 1, kind: input, shape index: {}]
  %s2 = inlined_call_operand.vmem [shape: f32[1,32], index: 2, kind: input, shape index: {}]
  %s3 = inlined_call_operand.hbm [shape: bf16[2,8,32], index: 3, kind: output, shape index: {}]
  %s4 = sld [smem:[#allocation0]]
  $region53: #{tpu_custom_call.1} parent=0
    _
  %s6 = ssub.s32 1, %s4
  %s7 = scalar_select 0, %s6, %s4
  $region1: #{tpu_custom_call.1} parent=0
    #allocation2 [shape = 'u8[8192]{0}', space=vmem, size = 0x2000, scoped, tag = 'input window, operand 0']
    #allocation3 [shape = 's32[2]{0}', space=sflag, size = 0x8, scoped, tag = 'scoped memory for tpu_custom_call.1']
    #allocation4 [shape = 's32[2]{0}', space=sflag, size = 0x8, scoped, tag = 'scoped memory for tpu_custom_call.1']
    #allocation5 [shape = 'u8[8192]{0}', space=vmem, size = 0x2000, scoped, tag = 'input window, operand 1, single buffered']
    #allocation6 [shape = 's32[1]{0}', space=sflag, size = 0x4, scoped, tag = 'scoped memory for tpu_custom_call.1']
    #allocation7 [shape = 'u8[4096]{0}', space=vmem, size = 0x1000, scoped, tag = 'output window, operand 0']
    %8 = vsyncpa [#allocation3], 0
    %s9 = scalar_lea.sflag [#allocation3], 1
    %10 = vsyncpa %s9, 0
    %11 = vsyncpa [#allocation6], 0
    %12 = vsyncpa [#allocation4], 0
    %s13 = scalar_lea.sflag [#allocation4], 1
    %14 = vsyncpa %s13, 0
    loop: start=0, step=1, limit=4
    $region2: #{tpu_custom_call.1} parent=1 // loop_pre_header
      _
    $region3: #{tpu_custom_call.1} parent=1 // loop_header
      %s16 = sphi 0, %s20
      %p17 = scmp.ge.s32.totalorder %s16, 4
      %s26 = sphi 0, %s28
      %s29 = sphi 0, %s26
      %s30 = sphi 0, %s29
      %s46 = sphi 0, %s30
      %s50 = sphi 0, %s50
      %s52 = sphi 0, %s50
      %s53 = sphi 0, %s52
      %s67 = sphi 0, %s53
      %s71 = sphi 0, %s71
      %s73 = sphi 0, %s71
      %s74 = sphi 0, %s73
      %s88 = sphi 0, %s74
      %s94 = sphi 0, %s96
      %s97 = sphi 0, %s94
      %s98 = sphi 0, %s97
      %s114 = sphi 0, %s98
    $region4: #{tpu_custom_call.1} parent=1 // loop_header_branch
      %19 = sbr.rel (%p17) target = $region8
    $region5: #{tpu_custom_call.1} parent=1 // loop_body
      %s21 = ssub.s32 %s16, 1
      %s22 = ssub.s32 %s16, 2
      %s23 = sadd.s32 %s16, 1
      %s24 = ssub.s32 %s16, %s23
      %p25 = scmp.eq.s32.totalorder %s24, 0
      %s27 = sadd.s32 %s26, 1
      %s28 = scalar_select %p25, %s26, %s27
      %p31 = pneg %p25
      %p32 = scmp.eq.s32.totalorder %s16, 1
      %p33 = por %p31, %p32
      %p34 = scmp.ne.s32.totalorder %s26, %s29
      %p35 = scmp.eq.s32.totalorder %s16, 0
      %p36 = por %p34, %p35
      %p37 = scmp.ne.s32.totalorder %s26, %s29
      %p38 = scmp.eq.s32.totalorder %s21, 1
      %p39 = por %p37, %p38
      %p40 = scmp.ne.s32.totalorder %s29, %s30
      %p41 = scmp.eq.s32.totalorder %s21, 0
      %p42 = por %p40, %p41
      %p43 = scmp.ne.s32.totalorder %s29, %s30
      %p44 = scmp.eq.s32.totalorder %s22, 1
      %p45 = por %p43, %p44
      %p47 = scmp.ne.s32.totalorder %s30, %s46
      %p48 = scmp.eq.s32.totalorder %s22, 0
      %p49 = por %p47, %p48
      %s51 = sadd.s32 %s50, 1
      %p54 = scmp.eq.s32.totalorder %s16, 1
      %p55 = scmp.ne.s32.totalorder %s50, %s52
      %p56 = scmp.eq.s32.totalorder %s16, 0
      %p57 = por %p55, %p56
      %p58 = scmp.ne.s32.totalorder %s50, %s52
      %p59 = scmp.eq.s32.totalorder %s21, 1
      %p60 = por %p58, %p59
      %p61 = scmp.ne.s32.totalorder %s52, %s53
      %p62 = scmp.eq.s32.totalorder %s21, 0
      %p63 = por %p61, %p62
      %p64 = scmp.ne.s32.totalorder %s52, %s53
      %p65 = scmp.eq.s32.totalorder %s22, 1
      %p66 = por %p64, %p65
      %p68 = scmp.ne.s32.totalorder %s53, %s67
      %p69 = scmp.eq.s32.totalorder %s22, 0
      %p70 = por %p68, %p69
      %s72 = sadd.s32 %s71, 1
      %p75 = scmp.eq.s32.totalorder %s16, 1
      %p76 = scmp.ne.s32.totalorder %s71, %s73
      %p77 = scmp.eq.s32.totalorder %s16, 0
      %p78 = por %p76, %p77
      %p79 = scmp.ne.s32.totalorder %s71, %s73
      %p80 = scmp.eq.s32.totalorder %s21, 1
      %p81 = por %p79, %p80
      %p82 = scmp.ne.s32.totalorder %s73, %s74
      %p83 = scmp.eq.s32.totalorder %s21, 0
      %p84 = por %p82, %p83
      %p85 = scmp.ne.s32.totalorder %s73, %s74
      %p86 = scmp.eq.s32.totalorder %s22, 1
      %p87 = por %p85, %p86
      %p89 = scmp.ne.s32.totalorder %s74, %s88
      %p90 = scmp.eq.s32.totalorder %s22, 0
      %p91 = por %p89, %p90
      %s92 = ssub.s32 %s16, %s23
      %p93 = scmp.eq.s32.totalorder %s92, 0
      %s95 = sadd.s32 %s94, 1
      %s96 = scalar_select %p93, %s94, %s95
      %p99 = pneg %p93
      %p100 = scmp.eq.s32.totalorder %s16, 1
      %p101 = por %p99, %p100
      %p102 = scmp.ne.s32.totalorder %s94, %s97
      %p103 = scmp.eq.s32.totalorder %s16, 0
      %p104 = por %p102, %p103
      %p105 = scmp.ne.s32.totalorder %s94, %s97
      %p106 = scmp.eq.s32.totalorder %s21, 1
      %p107 = por %p105, %p106
      %p108 = scmp.ne.s32.totalorder %s97, %s98
      %p109 = scmp.eq.s32.totalorder %s21, 0
      %p110 = por %p108, %p109
      %p111 = scmp.ne.s32.totalorder %s97, %s98
      %p112 = scmp.eq.s32.totalorder %s22, 1
      %p113 = por %p111, %p112
      %p115 = scmp.ne.s32.totalorder %s98, %s114
      %p116 = scmp.eq.s32.totalorder %s22, 0
      %p117 = por %p115, %p116
      %p118 = scmp.le.s32.totalorder 1, %s16
      %p119 = scmp.lt.s32.totalorder %s16, 3
      %p120 = pnand %p118, %p119
      %p121 = pneg %p120
      // Predicated region
      $region9: #{tpu_custom_call.1} parent=5 // pred_check
        _
      $region10: #{tpu_custom_call.1} parent=5 // pred_check_branch
        %123 = sbr.rel (%p120) target = $region12
      $region11: #{tpu_custom_call.1} parent=5 // pred_region
        %s124 = ssub.s32 %s16, 1
        // Predicated region
        $region13: #{tpu_custom_call.1} parent=11 // pred_check
          %p125 = pneg %p63
        $region14: #{tpu_custom_call.1} parent=11 // pred_check_branch
          %127 = sbr.rel (%p125) target = $region16
        $region15: #{tpu_custom_call.1} parent=11 // pred_region
          %129 = vsyncadd [#allocation6], 0
          %s130 = sshll.u32 %s1, 4
          %s131 = int_to_ptr.hbm [resolvable:$true] %s130
          %s132 = sshll.u32 [#allocation5], 4
          %s133 = int_to_ptr.vmem [resolvable:$true] %s132
          %138 = dma.hbm_to_vmem [thread:$0]  %s131, 256, %s133, [#allocation6], 64, 64, 4
        $region16: #{tpu_custom_call.1} parent=11 // pred_fallthru
          _
        // Predicated region
        $region17: #{tpu_custom_call.1} parent=11 // pred_check
          %p139 = pneg %p84
        $region18: #{tpu_custom_call.1} parent=11 // pred_check_branch
          %141 = sbr.rel (%p139) target = $region20
        $region19: #{tpu_custom_call.1} parent=11 // pred_region
          _
        $region20: #{tpu_custom_call.1} parent=11 // pred_fallthru
          _
      $region12: #{tpu_custom_call.1} parent=5 // pred_fallthru
        _
      %p142 = scmp.lt.s32.totalorder %s16, 2
      // Predicated region
      $region21: #{tpu_custom_call.1} parent=5 // pred_check
        %p143 = pneg %p142
      $region22: #{tpu_custom_call.1} parent=5 // pred_check_branch
        %145 = sbr.rel (%p143) target = $region24
      $region23: #{tpu_custom_call.1} parent=5 // pred_region
        // Predicated region
        $region25: #{tpu_custom_call.1} parent=23 // pred_check
          %p146 = pneg %p36
        $region26: #{tpu_custom_call.1} parent=23 // pred_check_branch
          %148 = sbr.rel (%p146) target = $region28
        $region27: #{tpu_custom_call.1} parent=23 // pred_region
          %s149 = sand.u32 %s26, 1
          %s150 = scalar_lea.sflag [#allocation3], %s149
          %s151 = sand.u32 %s26, 1
          %s152 = smul.addr %s151, 8
          %s153 = scalar_lea.vmem [#allocation2], %s152
          %155 = vsyncadd %s150, 0
          %s156 = smul.addr %s16, 8
          %s157 = scalar_lea.hbm %s0, %s156
          %s159 = sshll.u32 %s157, 4
          %s160 = int_to_ptr.hbm [resolvable:$true] %s159
          %s161 = sshll.u32 %s153, 4
          %s162 = int_to_ptr.vmem [resolvable:$true] %s161
          %164 = dma.hbm_to_vmem [thread:$0]  %s160, 128, %s162, %s150
        $region28: #{tpu_custom_call.1} parent=23 // pred_fallthru
          _
      $region24: #{tpu_custom_call.1} parent=5 // pred_fallthru
        _
      %p165 = scmp.le.s32.totalorder 1, %s16
      %p166 = scmp.lt.s32.totalorder %s16, 3
      %p167 = pnand %p165, %p166
      %p168 = pneg %p167
      // Predicated region
      $region29: #{tpu_custom_call.1} parent=5 // pred_check
        _
      $region30: #{tpu_custom_call.1} parent=5 // pred_check_branch
        %170 = sbr.rel (%p167) target = $region32
      $region31: #{tpu_custom_call.1} parent=5 // pred_region
        %s171 = ssub.s32 %s16, 1
        %s172 = sand.u32 %s29, 1
        %s173 = scalar_lea.sflag [#allocation3], %s172
        %s174 = sand.u32 %s29, 1
        %s175 = smul.addr %s174, 8
        %s176 = scalar_lea.vmem [#allocation2], %s175
        // Predicated region
        $region33: #{tpu_custom_call.1} parent=31 // pred_check
          %p177 = pneg %p42
        $region34: #{tpu_custom_call.1} parent=31 // pred_check_branch
          %179 = sbr.rel (%p177) target = $region36
        $region35: #{tpu_custom_call.1} parent=31 // pred_region
          %181 = dma.done %s173, 128
        $region36: #{tpu_custom_call.1} parent=31 // pred_fallthru
          _
        // Predicated region
        $region37: #{tpu_custom_call.1} parent=31 // pred_check
          %p182 = pneg %p63
        $region38: #{tpu_custom_call.1} parent=31 // pred_check_branch
          %184 = sbr.rel (%p182) target = $region40
        $region39: #{tpu_custom_call.1} parent=31 // pred_region
          %186 = dma.done [#allocation6], 256
        $region40: #{tpu_custom_call.1} parent=31 // pred_fallthru
          _
        %s187 = sand.u32 %s29, 1
        %s188 = scalar_lea.sflag [#allocation3], %s187
        %s189 = sand.u32 %s29, 1
        %s190 = smul.addr %s189, 8
        %s191 = scalar_lea.vmem [#allocation2], %s190
        %p192 = pneg %p42
        %p193 = pneg %p39
        %p194 = pneg %p63
        %p195 = pneg %p60
        %p196 = pneg %p84
        %p197 = pneg %p81
        %p198 = pneg %p110
        %p199 = pneg %p107
        %s200 = sand.u32 %s97, 1
        %s201 = scalar_lea.sflag [#allocation4], %s200
        %s202 = sand.u32 %s97, 1
        %s203 = smul.addr %s202, 4
        %s204 = scalar_lea.vmem [#allocation7], %s203
        %v206 = vld [vmem:[%s176] sm:$0xff]
        %v207 = vpack.c.bf16 %v206, %v206
        %v208 = vld [vmem:[#allocation5] sm:$0xf]
        %v209 = vld [vmem:[#allocation5 + $0x4] sm:$0xf]
        %v210 = vld [vmem:[#allocation5 + $0x8] sm:$0xf]
        %v211 = vld [vmem:[#allocation5 + $0xc] sm:$0xf]
        %v212 = vld [vmem:[%s2] sm:$0x1]
        %v214 = vperm.slane %v212, 0
        %v220 = vunpack.c.l.b16 %v208
        %v221 = vunpack.c.l.b16 %v209
        %v222 = vunpack.c.l.b16 %v210
        %v223 = vunpack.c.l.b16 %v211
        %v224 = vpack.c.b16 %v221, %v220
        %v225 = vpack.c.b16 %v223, %v222
        %vm228 = vcmask 261120
        %v230 = vsel %vm228, %v207, 0
        %232 = vmatpush.bf16.msra.mxu0 0
        %233 = vmatpush.bf16.msra.mxu0 0
        %234 = vmatpush.bf16.msra.mxu0 0
        %235 = vmatpush.bf16.msra.mxu0 0
        %236 = vmatpush.bf16.msra.mxu0 0
        %237 = vmatpush.bf16.msra.mxu0 0
        %238 = vmatpush.bf16.msra.mxu0 %v225
        %239 = vmatpush.bf16.msra.mxu0 %v224
        %240 = vmatmul.bf16.gmra.mxu0 %v230
        %v241 = vpop.f32.mrf.mxu0
        %v242 = vadd.f32 %v214, %v241
        %v243 = vpop.f32.mrf.mxu0
        %244 = vdwg.mxu0
        %v245 = vmul.f32 %v242, 0.5
        %v246 = vmul.f32 %v242, 0.70710677
        %v247 = vmul.f32 %v246, %v246
        %v248 = vmin.f32 16.0, %v247
        %v249 = vmul.f32 %v248, 2.1237322e-06
        %v250 = vadd.f32 %v249, 0.00028619796
        %v251 = vmul.f32 %v248, %v250
        %v252 = vadd.f32 %v251, 0.0036580483
        %v253 = vmul.f32 %v248, %v252
        %v254 = vadd.f32 %v253, 0.05243302
        %v255 = vmul.f32 %v248, %v254
        %v256 = vadd.f32 %v255, 0.18741608
        %v257 = vmul.f32 %v248, %v256
        %v258 = vadd.f32 %v257, 1.1283791
        %v259 = vmul.f32 %v246, %v258
        %v260 = vmul.f32 %v248, 3.8918573e-05
        %v261 = vadd.f32 %v260, 0.001143296
        %v262 = vmul.f32 %v248, %v261
        %v263 = vadd.f32 %v262, 0.014752088
        %v264 = vmul.f32 %v248, %v263
        %v265 = vadd.f32 %v264, 0.112945676
        %v266 = vmul.f32 %v248, %v265
        %v267 = vadd.f32 %v266, 0.4994258
        %v268 = vmul.f32 %v248, %v267
        %v269 = vadd.f32 %v268, 1.0
        %v270 = vrcp.pop %v269
        %v271 = vmul.f32 %v269, %v270
        %v272 = vsub.f32 1.0, %v271
        %v273 = vmul.f32 %v270, %v272
        %v274 = vadd.f32 %v270, %v273
        %vm275 = vweird.f32 %v269
        %vm276 = vweird.f32 %v270
        %vm277 = vmor %vm275, %vm276
        %v278 = vsel %vm277, %v270, %v274
        %v279 = vand.u32 2147483647, %v269
        %vm280 = vcmp.eq.f32.partialorder %v279, 8.507059e+37
        %v281 = vand.u32 %v269, 2147483648
        %v282 = vor.u32 1.1754944e-38, %v281
        %v283 = vsel %vm280, %v282, %v278
        %v284 = vmul.f32 %v259, %v283
        %v285 = vmin.f32 %v284, 1.0
        %v286 = vmax.f32 %v285, -1.0
        %v287 = vadd.f32 %v286, 1.0
        %v288 = vmul.f32 %v245, %v287
        %v289 = vsel %vm228, %v288, 0.0
        %290 = vadd.xlane.f32.xlu0 %v289
        %v291 = vpop.xlane.xlu0 %290
        %v292 = vrot.slane %v291, 4
        %v293 = vadd.f32 %v291, %v292
        %v294 = vrot.slane %v293, 2
        %v295 = vadd.f32 %v293, %v294
        %v296 = vrot.slane %v295, 1
        %v297 = vadd.f32 %v295, %v296
        %s298 = vtos %v297
        %v299 = vstv %s298
        %v300 = vrcp.pop 256.0
        %v301 = vmul.f32 256.0, %v300
        %v302 = vsub.f32 1.0, %v301
        %v303 = vmul.f32 %v300, %v302
        %v304 = vadd.f32 %v300, %v303
        %vm305 = vweird.f32 %v300
        %v306 = vsel %vm305, %v300, %v304
        %v307 = vmul.f32 %v299, %v306
        %v308 = vsub.f32 %v288, %v307
        %v309 = vmul.f32 %v308, %v308
        %v310 = vsel %vm228, %v309, 0.0
        %311 = vadd.xlane.f32.xlu0 %v310
        %v312 = vpop.xlane.xlu0 %311
        %v313 = vrot.slane %v312, 4
        %v314 = vadd.f32 %v312, %v313
        %v315 = vrot.slane %v314, 2
        %v316 = vadd.f32 %v314, %v315
        %v317 = vrot.slane %v316, 1
        %v318 = vadd.f32 %v316, %v317
        %s319 = vtos %v318
        %v320 = vstv %s319
        %v321 = vmul.f32 %v320, %v306
        %v322 = vadd.f32 %v321, 1e-12
        %v323 = vrsqrt.pop %v322
        %v324 = vmul.f32 %v323, %v322
        %v325 = vmul.f32 %v324, %v323
        %v326 = vmul.f32 0.5, %v325
        %v327 = vsub.f32 1.5, %v326
        %v328 = vmul.f32 %v323, %v327
        %vm329 = vweird.f32 %v322
        %vm330 = vweird.f32 %v323
        %vm331 = vmor %vm329, %vm330
        %v332 = vsel %vm331, %v323, %v328
        %v333 = vmul.f32 %v308, %v332
        %v334 = vpack.c.bf16 %v333, %v333
        %vm335 = vcmask 257024
        %336 = vst.msk [vmem:[%s204] sm:$0xf] %vm335, %v334
        %s337 = sand.u32 %s97, 1
        %s338 = scalar_lea.sflag [#allocation4], %s337
        %s339 = sand.u32 %s97, 1
        %s340 = smul.addr %s339, 4
        %s341 = scalar_lea.vmem [#allocation7], %s340
        // Predicated region
        $region41: #{tpu_custom_call.1} parent=31 // pred_check
          %p342 = pneg %p107
        $region42: #{tpu_custom_call.1} parent=31 // pred_check_branch
          %344 = sbr.rel (%p342) target = $region44
        $region43: #{tpu_custom_call.1} parent=31 // pred_region
          %346 = vsyncadd %s338, 0
          %s347 = smul.addr %s21, 4
          %s348 = scalar_lea.hbm %s3, %s347
          %s350 = sshll.u32 %s341, 4
          %s351 = int_to_ptr.vmem [resolvable:$true] %s350
          %s352 = sshll.u32 %s348, 4
          %s353 = int_to_ptr.hbm [resolvable:$true] %s352
          %355 = dma.vmem_to_hbm [thread:$0]  %s351, 64, %s353, %s338
        $region44: #{tpu_custom_call.1} parent=31 // pred_fallthru
          _
      $region32: #{tpu_custom_call.1} parent=5 // pred_fallthru
        _
      %p356 = scmp.le.s32.totalorder 2, %s16
      // Predicated region
      $region45: #{tpu_custom_call.1} parent=5 // pred_check
        %p357 = pneg %p356
      $region46: #{tpu_custom_call.1} parent=5 // pred_check_branch
        %359 = sbr.rel (%p357) target = $region48
      $region47: #{tpu_custom_call.1} parent=5 // pred_region
        %s360 = ssub.s32 %s16, 2
        // Predicated region
        $region49: #{tpu_custom_call.1} parent=47 // pred_check
          %p361 = pneg %p113
        $region50: #{tpu_custom_call.1} parent=47 // pred_check_branch
          %363 = sbr.rel (%p361) target = $region52
        $region51: #{tpu_custom_call.1} parent=47 // pred_region
          %s364 = sand.u32 %s98, 1
          %s365 = scalar_lea.sflag [#allocation4], %s364
          %s366 = sand.u32 %s98, 1
          %s367 = smul.addr %s366, 4
          %s368 = scalar_lea.vmem [#allocation7], %s367
          %370 = dma.done %s365, 64
        $region52: #{tpu_custom_call.1} parent=47 // pred_fallthru
          _
      $region48: #{tpu_custom_call.1} parent=5 // pred_fallthru
        _
    $region6: #{tpu_custom_call.1} parent=1 // loop_footer
      %s20 = sadd.s32 1, %s16
    $region7: #{tpu_custom_call.1} parent=1 // loop_footer_branch
      %15 = sbr.rel target = $region3
    $region8: #{tpu_custom_call.1} parent=1 // loop_exit
      _
    %371 = vsyncpa [#allocation3], 1
    %s372 = scalar_lea.sflag [#allocation3], 1
    %373 = vsyncpa %s372, 1
    %374 = vsyncpa [#allocation6], 1
    %375 = vsyncpa [#allocation4], 1
    %s376 = scalar_lea.sflag [#allocation4], 1
    %377 = vsyncpa %s376, 1

</llo_original>
